<compile_context>
chip_gen: v7x
topology: tpu7x:2x2x1
jax: 0.10.0
libtpu: 0.0.40
codegen_flags: <defaults>
</compile_context>

<pallas_src>
import functools

import jax
import jax.numpy as jnp
from jax.experimental import pallas as pl
from jax.experimental.pallas import tpu as pltpu


_UNROLL = 8  # partial-unroll factor for the DMA issue/drain loops


def _round_up(x: int, m: int) -> int:
    return ((x + m - 1) // m) * m


def _vmem_capacity_bytes() -> int:
    """Generation-aware VMEM size (128 MiB on v5e/v6e, 64 MiB per-core on v7x)."""
    try:
        cap = getattr(pltpu.get_tpu_info(), "vmem_capacity_bytes", None)
        if cap:
            return int(cap)
    except Exception:
        pass
    return 64 * 1024 * 1024  # conservative default (v7x per-core)


# ---------------------------------------------------------------------------
# Path 1: small vocab -> one-hot MXU matmul with a VMEM-resident table.
# ---------------------------------------------------------------------------
def _onehot_matmul_kernel(ids_ref, col_ref, w_ref, out_ref, *, precision):
    # ids_ref: (T, 1) int32 token ids for this tile
    # col_ref: (T, V) int32 column indices; constant block index -> fetched once
    #          per core and VMEM-resident (replaces a per-step VPU iota).
    # w_ref:   (V, D) full table; constant block index -> VMEM-resident.
    # out_ref: (T, D) gathered rows (lane-dense, D % 128 == 0).
    eq = ids_ref[...] == col_ref[...]                              # (T, V) bool
    one_hot = jnp.where(eq,                                         # directly in MXU
                        jnp.ones((), w_ref.dtype),                  # operand dtype
                        jnp.zeros((), w_ref.dtype))
    rows = jax.lax.dot_general(
        one_hot, w_ref[...],
        dimension_numbers=(((1,), (0,)), ((), ())),
        preferred_element_type=jnp.float32,
        precision=precision,
    )
    out_ref[...] = rows.astype(out_ref.dtype)


def _onehot_lookup(flat_ids, weight, tile, vmem_limit):
    n_pad = flat_ids.shape[0]
    vocab, dim = weight.shape
    itemsize = int(weight.dtype.itemsize)

    # bf16 (and narrower) tables: MXU-native single pass, exact for a 0/1 one-hot.
    # f32 tables: HIGHEST keeps the gather (numerically) exact.
    precision = (jax.lax.Precision.HIGHEST if weight.dtype == jnp.float32
                 else jax.lax.Precision.DEFAULT)

    col = jnp.broadcast_to(jnp.arange(vocab, dtype=jnp.int32)[None, :],
                           (tile, vocab))

    cost = pl.CostEstimate(
        flops=int(2 * n_pad * vocab * dim),
        transcendentals=0,
        bytes_accessed=int(vocab * dim * itemsize + n_pad * dim * itemsize
                           + n_pad * 4 + tile * vocab * 4),
    )
    kernel = functools.partial(_onehot_matmul_kernel, precision=precision)
    return pl.pallas_call(
        kernel,
        out_shape=jax.ShapeDtypeStruct((n_pad, dim), weight.dtype),
        grid_spec=pltpu.PrefetchScalarGridSpec(
            num_scalar_prefetch=0,
            grid=(n_pad // tile,),
            in_specs=[
                pl.BlockSpec((tile, 1), lambda i: (i, 0)),        # token-id tile
                pl.BlockSpec((tile, vocab), lambda i: (0, 0)),    # column indices
                pl.BlockSpec((vocab, dim), lambda i: (0, 0)),     # table, resident
            ],
            out_specs=pl.BlockSpec((tile, dim), lambda i: (i, 0)),
        ),
        compiler_params=pltpu.CompilerParams(
            dimension_semantics=("parallel",),                    # v7x: both cores
            vmem_limit_bytes=int(vmem_limit),
        ),
        cost_estimate=cost,
    )(flat_ids.reshape(n_pad, 1), col, weight)


# ---------------------------------------------------------------------------
# Path 2: large vocab -> batched manual row-DMA gather straight into out_ref.
# ---------------------------------------------------------------------------
def _dma_gather_kernel(ids_ref, w_hbm_ref, out_ref, copy_sem, *,
                       tokens_per_step, n_tokens):
    # ids_ref:   (n_pad,) int32 token ids, scalar-prefetched into SMEM
    # w_hbm_ref: (V, D) embedding table left in HBM (memory_space=pl.ANY)
    # out_ref:   (T, D) pipelined output VMEM block -- DMA destination
    # copy_sem:  single DMA semaphore shared by all equal-sized row copies
    base = pl.program_id(0) * tokens_per_step
    padded = (n_tokens % tokens_per_step) != 0          # static

    def _issue_one(t):
        tok = ids_ref[base + t]
        pltpu.make_async_copy(
            w_hbm_ref.at[pl.ds(tok, 1), :],
            out_ref.at[pl.ds(t, 1), :],
            copy_sem,
        ).start()

    def _drain_one(t):
        pltpu.make_async_copy(
            w_hbm_ref.at[pl.ds(0, 1), :],
            out_ref.at[pl.ds(t, 1), :],
            copy_sem,
        ).wait()

    # Issue all row copies first (many DMAs in flight), partially unrolled so
    # the scheduler can co-issue SMEM id loads, address math and pushes.
    @pl.loop(0, tokens_per_step // _UNROLL)
    def _issue(g):
        for u in range(_UNROLL):
            t = g * _UNROLL + u
            if padded:
                pl.when(base + t < n_tokens)(lambda: _issue_one(t))
            else:
                _issue_one(t)

    # Drain: each wait decrements the shared semaphore by one row's byte count.
    # Guard must mirror the issue guard exactly so counts stay consistent.
    @pl.loop(0, tokens_per_step // _UNROLL)
    def _drain(g):
        for u in range(_UNROLL):
            t = g * _UNROLL + u
            if padded:
                pl.when(base + t < n_tokens)(lambda: _drain_one(t))
            else:
                _drain_one(t)


def _dma_lookup(flat_ids, weight, tile, n_tokens, vmem_limit):
    assert tile % _UNROLL == 0
    n_pad = flat_ids.shape[0]
    vocab, dim = weight.shape
    itemsize = int(weight.dtype.itemsize)
    cost = pl.CostEstimate(
        flops=0,
        transcendentals=0,
        bytes_accessed=int(2 * n_pad * dim * itemsize + n_pad * 4),
    )
    # TODO(synk): for 100k+ token sequences the whole-array scalar prefetch of
    # ids can exceed SMEM; a per-tile SMEM id fetch would bound it to tile*4 B.
    kernel = functools.partial(_dma_gather_kernel, tokens_per_step=tile,
                               n_tokens=n_tokens)
    return pl.pallas_call(
        kernel,
        out_shape=jax.ShapeDtypeStruct((n_pad, dim), weight.dtype),
        grid_spec=pltpu.PrefetchScalarGridSpec(
            num_scalar_prefetch=1,                               # token ids -> SMEM
            grid=(n_pad // tile,),
            in_specs=[pl.BlockSpec(memory_space=pl.ANY)],        # table stays in HBM
            out_specs=pl.BlockSpec((tile, dim), lambda i, ids: (i, 0)),
            scratch_shapes=[pltpu.SemaphoreType.DMA(())],
        ),
        compiler_params=pltpu.CompilerParams(
            dimension_semantics=("parallel",),                   # v7x: both cores
            vmem_limit_bytes=int(vmem_limit),
        ),
        cost_estimate=cost,
    )(flat_ids, weight)


# ---------------------------------------------------------------------------
# Public wrapper: equivalent of PyTorch `weight[token_ids]`.
# ---------------------------------------------------------------------------
def embedding_lookup(token_ids: jax.Array, weight: jax.Array, *,
                     max_tokens_per_step: int = 512,
                     vmem_table_budget: int | None = None) -> jax.Array:
    orig_shape = token_ids.shape
    vocab, dim = weight.shape

    flat = token_ids.reshape(-1).astype(jnp.int32)
    # TODO(synk): PyTorch raises on out-of-range ids; there is no clean in-kernel
    # "raise" on TPU, so ids are clamped to [0, V-1] instead.
    flat = jnp.clip(flat, 0, vocab - 1)
    n_tokens = int(flat.shape[0])

    # Lane-dense output stores: pad D up to a multiple of 128. (Ideally done once
    # at table-creation time; here it is a per-call copy of the table.)
    dim_p = _round_up(max(dim, 128), 128)
    w = weight if dim_p == dim else jnp.pad(weight, ((0, 0), (0, dim_p - dim)))
    itemsize = int(w.dtype.itemsize)

    vmem_cap = _vmem_capacity_bytes()
    # Generation-aware budgets: bigger resident tables / limits on 128-MiB chips.
    table_budget = (min(16 * 1024 * 1024, vmem_cap // 8)
                    if vmem_table_budget is None else vmem_table_budget)
    vmem_limit_onehot = min(96 * 1024 * 1024, (vmem_cap * 3) // 4)
    vmem_limit_dma = min(48 * 1024 * 1024, vmem_cap // 2)

    table_bytes = vocab * dim_p * itemsize
    # Per-row DMAs are descriptor/latency bound, so for small D keep the one-hot
    # path up to larger vocabs.  TODO(synk): V-chunked one-hot accumulation (inner
    # "arbitrary" grid axis) would extend this to even bigger vocabs.
    max_onehot_vocab = 8192 if dim_p <= 256 else 2048
    use_onehot = (table_bytes <= table_budget) and (vocab <= max_onehot_vocab)

    if use_onehot:
        # Tile bounded by the column-index block (T*V*4 <= 2 MiB) and the output
        # block (T*D*itemsize <= 4 MiB), capped at max_tokens_per_step.
        tile = min(max_tokens_per_step,
                   max(8, (2 * 1024 * 1024) // (4 * vocab) // 8 * 8),
                   max(8, (4 * 1024 * 1024) // (dim_p * itemsize) // 8 * 8))
    else:
        # D-aware: keep each (double-buffered) output buffer within ~4 MiB on v7x
        # (64 MiB VMEM) or ~8 MiB on v5e/v6e (128 MiB VMEM).
        out_target = (4 * 1024 * 1024 if vmem_cap <= 64 * 1024 * 1024
                      else 8 * 1024 * 1024)
        tile = min(max_tokens_per_step,
                   max(8, out_target // (dim_p * itemsize) // 8 * 8))
    tile = max(8, min(tile, _round_up(n_tokens, 8)))
    # v7x megacore: a 1-step grid leaves one TensorCore idle -> halve the tile.
    if _round_up(n_tokens, tile) // tile < 2 and tile > 8:
        tile = max(8, _round_up(tile // 2, 8))

    n_pad = _round_up(n_tokens, tile)
    if n_pad != n_tokens:
        flat = jnp.pad(flat, (0, n_pad - n_tokens))

    if use_onehot:
        out = _onehot_lookup(flat, w, tile, vmem_limit_onehot)
    else:
        out = _dma_lookup(flat, w, tile, n_tokens, vmem_limit_dma)

    if n_pad != n_tokens:
        out = out[:n_tokens]
    if dim_p != dim:
        out = out[:, :dim]
    return out.reshape(*orig_shape, dim)


def init_embedding_weight(key, num_embeddings: int, embedding_dim: int,
                          dtype=jnp.float32) -> jax.Array:
    # Mirrors torch.nn.init.trunc_normal_(weight, mean=0, std=1, a=-3, b=3).
    return jax.random.truncated_normal(
        key, lower=-3.0, upper=3.0, shape=(num_embeddings, embedding_dim)
    ).astype(dtype)


if __name__ == "__main__":
    num_embeddings = 64
    embedding_dim = 128
    batch, seq = 2, 8

    root = jax.random.PRNGKey(0)
    k_w, k_ids = jax.random.split(root)

    weight = init_embedding_weight(k_w, num_embeddings, embedding_dim)
    token_ids = jax.random.randint(k_ids, (batch, seq), 0, num_embeddings,
                                   dtype=jnp.int32)

    # Reference: plain JAX advanced indexing (same semantics as weight[token_ids]).
    ref = weight[token_ids]

    # Path 1a: small-vocab one-hot MXU matmul, f32 table (HIGHEST precision path).
    out_onehot = jax.block_until_ready(embedding_lookup(token_ids, weight))
    assert out_onehot.shape == (batch, seq, embedding_dim), out_onehot.shape
    assert out_onehot.dtype == weight.dtype, out_onehot.dtype
    assert jnp.allclose(out_onehot, ref, rtol=0.0, atol=1e-6), \
        "one-hot matmul embedding (f32) mismatch"

    # Path 1b: bf16 table -> DEFAULT precision, must be bit-exact.
    weight_bf16 = weight.astype(jnp.bfloat16)
    ref_bf16 = weight_bf16[token_ids]
    out_bf16 = jax.block_until_ready(embedding_lookup(token_ids, weight_bf16))
    assert out_bf16.dtype == jnp.bfloat16, out_bf16.dtype
    assert jnp.array_equal(out_bf16, ref_bf16), \
        "one-hot matmul embedding (bf16) mismatch"

    # Path 2: batched manual row-DMA gather (forced, for coverage of large vocabs).
    out_dma = jax.block_until_ready(
        embedding_lookup(token_ids, weight, vmem_table_budget=0))
    assert out_dma.shape == (batch, seq, embedding_dim), out_dma.shape
    assert jnp.array_equal(out_dma, ref), "DMA-gather embedding mismatch"

    print("KERNEL_OK")
</pallas_src>

<mosaic_0001>
module attributes {stable_mosaic.version = 11 : i64} {
  func.func @_onehot_matmul_kernel(%arg0: i32, %arg1: memref<8x1xi32, #tpu.memory_space<vmem>>, %arg2: memref<8x64xi32, #tpu.memory_space<vmem>>, %arg3: memref<64x128xf32, #tpu.memory_space<vmem>>, %arg4: memref<8x128xf32, #tpu.memory_space<vmem>>) attributes {dimension_semantics = [#tpu.dimension_semantics<parallel>], iteration_bounds = array<i64: 2>, scalar_prefetch = 0 : i64, scratch_operands = 0 : i64, tpu.core_type = #tpu.core_type<tc>, window_params = [{transform_indices = @transform_0, window_bounds = array<i64: 8, 1>}, {pipeline_mode = #tpu.pipeline_mode<synchronous>, transform_indices = @transform_1, window_bounds = array<i64: 8, 64>}, {pipeline_mode = #tpu.pipeline_mode<synchronous>, transform_indices = @transform_2, window_bounds = array<i64: 64, 128>}, {transform_indices = @transform_3, window_bounds = array<i64: 8, 128>}]} {
    %c0 = arith.constant 0 : index
    %c0_0 = arith.constant 0 : index
    %0 = vector.load %arg1[%c0, %c0_0] : memref<8x1xi32, #tpu.memory_space<vmem>>, vector<8x1xi32>
    %c0_1 = arith.constant 0 : index
    %c0_2 = arith.constant 0 : index
    %1 = vector.load %arg2[%c0_1, %c0_2] : memref<8x64xi32, #tpu.memory_space<vmem>>, vector<8x64xi32>
    %2 = vector.broadcast %0 : vector<8x1xi32> to vector<8x64xi32>
    %3 = arith.cmpi eq, %2, %1 : vector<8x64xi32>
    %cst = arith.constant 1.000000e+00 : f32
    %cst_3 = arith.constant 0.000000e+00 : f32
    %4 = vector.broadcast %cst : f32 to vector<8x64xf32>
    %5 = vector.broadcast %cst_3 : f32 to vector<8x64xf32>
    %6 = arith.select %3, %4, %5 : vector<8x64xi1>, vector<8x64xf32>
    %c0_4 = arith.constant 0 : index
    %c0_5 = arith.constant 0 : index
    %7 = vector.load %arg3[%c0_4, %c0_5] : memref<64x128xf32, #tpu.memory_space<vmem>>, vector<64x128xf32>
    %cst_6 = arith.constant dense<0.000000e+00> : vector<8x128xf32>
    %8 = tpu.matmul %6, %7, %cst_6 {dimension_numbers = #tpu.dot_dimension_numbers<[1], [0], [0], [1], [0, 0, 1, 1], [], []>, precision = #tpu.contract_precision<fp32>} : vector<8x64xf32>, vector<64x128xf32>, vector<8x128xf32> -> vector<8x128xf32>
    %c0_7 = arith.constant 0 : index
    %c0_8 = arith.constant 0 : index
    %9 = vector.load %arg4[%c0_7, %c0_8] : memref<8x128xf32, #tpu.memory_space<vmem>>, vector<8x128xf32>
    tpu.vector_store %arg4[%c0_7, %c0_8], %8 {strides = array<i32>} : memref<8x128xf32, #tpu.memory_space<vmem>>, vector<8x128xf32>,
    return
  }
  func.func @transform_0(%arg0: i32) -> (i32, i32) {
    %c0_i32 = arith.constant 0 : i32
    %c0_i32_0 = arith.constant 0 : i32
    return %arg0, %c0_i32 : i32, i32
  }
  func.func @transform_1(%arg0: i32) -> (i32, i32) {
    %c0_i32 = arith.constant 0 : i32
    %c0_i32_0 = arith.constant 0 : i32
    %c0_i32_1 = arith.constant 0 : i32
    return %c0_i32, %c0_i32_0 : i32, i32
  }
  func.func @transform_2(%arg0: i32) -> (i32, i32) {
    %c0_i32 = arith.constant 0 : i32
    %c0_i32_0 = arith.constant 0 : i32
    %c0_i32_1 = arith.constant 0 : i32
    return %c0_i32, %c0_i32_0 : i32, i32
  }
  func.func @transform_3(%arg0: i32) -> (i32, i32) {
    %c0_i32 = arith.constant 0 : i32
    %c0_i32_0 = arith.constant 0 : i32
    return %arg0, %c0_i32 : i32, i32
  }
}

</mosaic_0001>

<llo_original>
// kernel: tpu_custom_call.1
$region0: #{tpu_custom_call.1}
  #allocation0 [shape = 'u32[]', space=smem, size = 0x4, offset = 0x4, fixed_abs, tag = 'smem constant byte address 0x4 - core index']
  #allocation1 [shape = 'u32[144,128]{1,0:T(1,128)}', space=vmem, size = 0x12000, scoped, tag = 'internal scratch']
  %s0 = inlined_call_operand.vmem [shape: s32[16,1], index: 0, kind: input, shape index: {}]
  %s1 = inlined_call_operand.vmem [shape: s32[8,64], index: 1, kind: input, shape index: {}]
  %s2 = inlined_call_operand.hbm [shape: f32[64,128], index: 2, kind: input, shape index: {}]
  %s3 = inlined_call_operand.hbm [shape: f32[16,128], index: 3, kind: output, shape index: {}]
  %s4 = sld [smem:[#allocation0]]
  $region49: #{tpu_custom_call.1} parent=0
    _
  %s6 = ssub.s32 1, %s4
  %s7 = scalar_select 0, %s6, %s4
  $region1: #{tpu_custom_call.1} parent=0
    #allocation2 [shape = 'u8[32768]{0}', space=vmem, size = 0x8000, scoped, tag = 'input window, operand 2, single buffered']
    #allocation3 [shape = 's32[2]{0}', space=sflag, size = 0x8, scoped, tag = 'scoped memory for tpu_custom_call.1']
    #allocation4 [shape = 's32[2]{0}', space=sflag, size = 0x8, scoped, tag = 'scoped memory for tpu_custom_call.1']
    #allocation5 [shape = 'u8[8192]{0}', space=vmem, size = 0x2000, scoped, tag = 'output window, operand 0']
    %8 = vsyncpa [#allocation3], 0
    %9 = vsyncpa [#allocation4], 0
    %s10 = scalar_lea.sflag [#allocation4], 1
    %11 = vsyncpa %s10, 0
    loop: start=0, step=1, limit=4
    $region2: #{tpu_custom_call.1} parent=1 // loop_pre_header
      _
    $region3: #{tpu_custom_call.1} parent=1 // loop_header
      %s13 = sphi 0, %s17
      %p14 = scmp.ge.s32.totalorder %s13, 4
      %s23 = sphi 0, %s25
      %s26 = sphi 0, %s23
      %s27 = sphi 0, %s26
      %s43 = sphi 0, %s27
      %s47 = sphi 0, %s47
      %s49 = sphi 0, %s47
      %s50 = sphi 0, %s49
      %s64 = sphi 0, %s50
      %s68 = sphi 0, %s68
      %s70 = sphi 0, %s68
      %s71 = sphi 0, %s70
      %s85 = sphi 0, %s71
      %s91 = sphi 0, %s93
      %s94 = sphi 0, %s91
      %s95 = sphi 0, %s94
      %s111 = sphi 0, %s95
    $region4: #{tpu_custom_call.1} parent=1 // loop_header_branch
      %16 = sbr.rel (%p14) target = $region8
    $region5: #{tpu_custom_call.1} parent=1 // loop_body
      %s18 = ssub.s32 %s13, 1
      %s19 = ssub.s32 %s13, 2
      %s20 = sadd.s32 %s13, 1
      %s21 = ssub.s32 %s13, %s20
      %p22 = scmp.eq.s32.totalorder %s21, 0
      %s24 = sadd.s32 %s23, 1
      %s25 = scalar_select %p22, %s23, %s24
      %p28 = pneg %p22
      %p29 = scmp.eq.s32.totalorder %s13, 1
      %p30 = por %p28, %p29
      %p31 = scmp.ne.s32.totalorder %s23, %s26
      %p32 = scmp.eq.s32.totalorder %s13, 0
      %p33 = por %p31, %p32
      %p34 = scmp.ne.s32.totalorder %s23, %s26
      %p35 = scmp.eq.s32.totalorder %s18, 1
      %p36 = por %p34, %p35
      %p37 = scmp.ne.s32.totalorder %s26, %s27
      %p38 = scmp.eq.s32.totalorder %s18, 0
      %p39 = por %p37, %p38
      %p40 = scmp.ne.s32.totalorder %s26, %s27
      %p41 = scmp.eq.s32.totalorder %s19, 1
      %p42 = por %p40, %p41
      %p44 = scmp.ne.s32.totalorder %s27, %s43
      %p45 = scmp.eq.s32.totalorder %s19, 0
      %p46 = por %p44, %p45
      %s48 = sadd.s32 %s47, 1
      %p51 = scmp.eq.s32.totalorder %s13, 1
      %p52 = scmp.ne.s32.totalorder %s47, %s49
      %p53 = scmp.eq.s32.totalorder %s13, 0
      %p54 = por %p52, %p53
      %p55 = scmp.ne.s32.totalorder %s47, %s49
      %p56 = scmp.eq.s32.totalorder %s18, 1
      %p57 = por %p55, %p56
      %p58 = scmp.ne.s32.totalorder %s49, %s50
      %p59 = scmp.eq.s32.totalorder %s18, 0
      %p60 = por %p58, %p59
      %p61 = scmp.ne.s32.totalorder %s49, %s50
      %p62 = scmp.eq.s32.totalorder %s19, 1
      %p63 = por %p61, %p62
      %p65 = scmp.ne.s32.totalorder %s50, %s64
      %p66 = scmp.eq.s32.totalorder %s19, 0
      %p67 = por %p65, %p66
      %s69 = sadd.s32 %s68, 1
      %p72 = scmp.eq.s32.totalorder %s13, 1
      %p73 = scmp.ne.s32.totalorder %s68, %s70
      %p74 = scmp.eq.s32.totalorder %s13, 0
      %p75 = por %p73, %p74
      %p76 = scmp.ne.s32.totalorder %s68, %s70
      %p77 = scmp.eq.s32.totalorder %s18, 1
      %p78 = por %p76, %p77
      %p79 = scmp.ne.s32.totalorder %s70, %s71
      %p80 = scmp.eq.s32.totalorder %s18, 0
      %p81 = por %p79, %p80
      %p82 = scmp.ne.s32.totalorder %s70, %s71
      %p83 = scmp.eq.s32.totalorder %s19, 1
      %p84 = por %p82, %p83
      %p86 = scmp.ne.s32.totalorder %s71, %s85
      %p87 = scmp.eq.s32.totalorder %s19, 0
      %p88 = por %p86, %p87
      %s89 = ssub.s32 %s13, %s20
      %p90 = scmp.eq.s32.totalorder %s89, 0
      %s92 = sadd.s32 %s91, 1
      %s93 = scalar_select %p90, %s91, %s92
      %p96 = pneg %p90
      %p97 = scmp.eq.s32.totalorder %s13, 1
      %p98 = por %p96, %p97
      %p99 = scmp.ne.s32.totalorder %s91, %s94
      %p100 = scmp.eq.s32.totalorder %s13, 0
      %p101 = por %p99, %p100
      %p102 = scmp.ne.s32.totalorder %s91, %s94
      %p103 = scmp.eq.s32.totalorder %s18, 1
      %p104 = por %p102, %p103
      %p105 = scmp.ne.s32.totalorder %s94, %s95
      %p106 = scmp.eq.s32.totalorder %s18, 0
      %p107 = por %p105, %p106
      %p108 = scmp.ne.s32.totalorder %s94, %s95
      %p109 = scmp.eq.s32.totalorder %s19, 1
      %p110 = por %p108, %p109
      %p112 = scmp.ne.s32.totalorder %s95, %s111
      %p113 = scmp.eq.s32.totalorder %s19, 0
      %p114 = por %p112, %p113
      %p115 = scmp.le.s32.totalorder 1, %s13
      %p116 = scmp.lt.s32.totalorder %s13, 3
      %p117 = pnand %p115, %p116
      %p118 = pneg %p117
      // Predicated region
      $region9: #{tpu_custom_call.1} parent=5 // pred_check
        _
      $region10: #{tpu_custom_call.1} parent=5 // pred_check_branch
        %120 = sbr.rel (%p117) target = $region12
      $region11: #{tpu_custom_call.1} parent=5 // pred_region
        %s121 = ssub.s32 %s13, 1
        // Predicated region
        $region13: #{tpu_custom_call.1} parent=11 // pred_check
          %p122 = pneg %p60
        $region14: #{tpu_custom_call.1} parent=11 // pred_check_branch
          %124 = sbr.rel (%p122) target = $region16
        $region15: #{tpu_custom_call.1} parent=11 // pred_region
          _
        $region16: #{tpu_custom_call.1} parent=11 // pred_fallthru
          _
        // Predicated region
        $region17: #{tpu_custom_call.1} parent=11 // pred_check
          %p125 = pneg %p81
        $region18: #{tpu_custom_call.1} parent=11 // pred_check_branch
          %127 = sbr.rel (%p125) target = $region20
        $region19: #{tpu_custom_call.1} parent=11 // pred_region
          %s129 = ssub.s32 1024, 1024
          %130 = vsyncadd [#allocation3], %s129
          %s131 = sshll.u32 [#allocation2], 4
          %s132 = int_to_ptr.vmem [resolvable:$true] %s131
          %137 = dma.hbm_to_vmem [thread:$0]  %s2, 1024, %s132, [#allocation3], 128, 128, 8
        $region20: #{tpu_custom_call.1} parent=11 // pred_fallthru
          _
      $region12: #{tpu_custom_call.1} parent=5 // pred_fallthru
        _
      %p138 = scmp.lt.s32.totalorder %s13, 2
      // Predicated region
      $region21: #{tpu_custom_call.1} parent=5 // pred_check
        %p139 = pneg %p138
      $region22: #{tpu_custom_call.1} parent=5 // pred_check_branch
        %141 = sbr.rel (%p139) target = $region24
      $region23: #{tpu_custom_call.1} parent=5 // pred_region
        // Predicated region
        $region25: #{tpu_custom_call.1} parent=23 // pred_check
          %p142 = pneg %p33
        $region26: #{tpu_custom_call.1} parent=23 // pred_check_branch
          %144 = sbr.rel (%p142) target = $region28
        $region27: #{tpu_custom_call.1} parent=23 // pred_region
          %p145 = scmp.lt.s32.totalorder %s13, 1
          %s146 = scalar_select %p145, %s13, 1
          %s147 = smul.addr %s146, 8
          %s148 = scalar_lea.vmem %s0, %s147
        $region28: #{tpu_custom_call.1} parent=23 // pred_fallthru
          _
      $region24: #{tpu_custom_call.1} parent=5 // pred_fallthru
        _
      %p149 = scmp.le.s32.totalorder 1, %s13
      %p150 = scmp.lt.s32.totalorder %s13, 3
      %p151 = pnand %p149, %p150
      %p152 = pneg %p151
      // Predicated region
      $region29: #{tpu_custom_call.1} parent=5 // pred_check
        _
      $region30: #{tpu_custom_call.1} parent=5 // pred_check_branch
        %154 = sbr.rel (%p151) target = $region32
      $region31: #{tpu_custom_call.1} parent=5 // pred_region
        %s155 = ssub.s32 %s13, 1
        // Predicated region
        $region33: #{tpu_custom_call.1} parent=31 // pred_check
          %p156 = pneg %p81
        $region34: #{tpu_custom_call.1} parent=31 // pred_check_branch
          %158 = sbr.rel (%p156) target = $region36
        $region35: #{tpu_custom_call.1} parent=31 // pred_region
          %159 = dma.done [#allocation3], 1024
        $region36: #{tpu_custom_call.1} parent=31 // pred_fallthru
          _
        %p160 = scmp.lt.s32.totalorder %s18, 1
        %s161 = scalar_select %p160, %s18, 1
        %s162 = smul.addr %s161, 8
        %s163 = scalar_lea.vmem %s0, %s162
        %p164 = pneg %p39
        %p165 = pneg %p36
        %p166 = pneg %p60
        %p167 = pneg %p57
        %p168 = pneg %p81
        %p169 = pneg %p78
        %p170 = pneg %p107
        %p171 = pneg %p104
        %s172 = sand.u32 %s94, 1
        %s173 = scalar_lea.sflag [#allocation4], %s172
        %s174 = sand.u32 %s94, 1
        %s175 = smul.addr %s174, 8
        %s176 = scalar_lea.vmem [#allocation5], %s175
        %p177 = scmp.lt.s32.totalorder %s18, 1
        %s178 = scalar_select %p177, %s18, 1
        %s179 = smul.addr %s178, 8
        %s180 = scalar_lea.vmem %s0, %s179
        %v181 = vld [vmem:[%s180] sm:$0xff]
        %v182 = vld [vmem:[%s1] sm:$0xff]
        %183 = vset.pattern.permute.xlu0 0
        %184 = vperm.xlu0 %183, %v181
        %v185 = vpop.permute.xlu0 %184
        %vm186 = vcmp.eq.s32.totalorder %v185, %v182
        %v187 = vsel %vm186, 1.0, 0.0
        %v188 = vld [vmem:[#allocation2] sm:$0xff]
        %v189 = vld [vmem:[#allocation2 + $0x8] sm:$0xff]
        %v190 = vld [vmem:[#allocation2 + $0x10] sm:$0xff]
        %v191 = vld [vmem:[#allocation2 + $0x18] sm:$0xff]
        %v192 = vld [vmem:[#allocation2 + $0x20] sm:$0xff]
        %v193 = vld [vmem:[#allocation2 + $0x28] sm:$0xff]
        %v194 = vld [vmem:[#allocation2 + $0x30] sm:$0xff]
        %v195 = vld [vmem:[#allocation2 + $0x38] sm:$0xff]
        %vm196 = vcmask 523264
        %v198 = vsel %vm196, %v187, 0
        %200 = vmatprep.subr.mxu0 0.0
        %v201 = vand.u32 %v188, 4294901760
        %202 = vmatpush1.msra.mxu0 %v201
        %203 = vmatprep.subr.mxu0 0.0
        %v204 = vand.u32 %v189, 4294901760
        %205 = vmatpush1.msra.mxu0 %v204
        %206 = vmatprep.subr.mxu0 0.0
        %v207 = vand.u32 %v190, 4294901760
        %208 = vmatpush1.msra.mxu0 %v207
        %209 = vmatprep.subr.mxu0 0.0
        %v210 = vand.u32 %v191, 4294901760
        %211 = vmatpush1.msra.mxu0 %v210
        %212 = vmatprep.subr.mxu0 0.0
        %v213 = vand.u32 %v192, 4294901760
        %214 = vmatpush1.msra.mxu0 %v213
        %215 = vmatprep.subr.mxu0 0.0
        %v216 = vand.u32 %v193, 4294901760
        %217 = vmatpush1.msra.mxu0 %v216
        %218 = vmatprep.subr.mxu0 0.0
        %v219 = vand.u32 %v194, 4294901760
        %220 = vmatpush1.msra.mxu0 %v219
        %221 = vmatprep.subr.mxu0 0.0
        %v222 = vand.u32 %v195, 4294901760
        %223 = vmatpush1.msra.mxu0 %v222
        %224 = vmatprep.subr.mxu0 0.0
        %225 = vmatpush1.msra.mxu0 0.0
        %226 = vmatprep.subr.mxu0 0.0
        %227 = vmatpush1.msra.mxu0 0.0
        %228 = vmatprep.subr.mxu0 0.0
        %229 = vmatpush1.msra.mxu0 0.0
        %230 = vmatprep.subr.mxu0 0.0
        %231 = vmatpush1.msra.mxu0 0.0
        %232 = vmatprep.subr.mxu0 0.0
        %233 = vmatpush1.msra.mxu0 0.0
        %234 = vmatprep.subr.mxu0 0.0
        %235 = vmatpush1.msra.mxu0 0.0
        %236 = vmatprep.subr.mxu0 0.0
        %237 = vmatpush1.msra.mxu0 0.0
        %238 = vmatprep.subr.mxu0 0.0
        %239 = vmatpush1.msra.mxu0 0.0
        %240 = vmatprep.subr.mxu0 0.0
        %241 = vmatpush1.msra.mxu0 0.0
        %242 = vmatprep.subr.mxu0 0.0
        %243 = vmatpush1.msra.mxu0 0.0
        %244 = vmatprep.subr.mxu0 0.0
        %245 = vmatpush1.msra.mxu0 0.0
        %246 = vmatprep.subr.mxu0 0.0
        %247 = vmatpush1.msra.mxu0 0.0
        %248 = vmatprep.subr.mxu0 0.0
        %249 = vmatpush1.msra.mxu0 0.0
        %250 = vmatprep.subr.mxu0 0.0
        %251 = vmatpush1.msra.mxu0 0.0
        %252 = vmatprep.subr.mxu0 0.0
        %253 = vmatpush1.msra.mxu0 0.0
        %254 = vmatprep.subr.mxu0 0.0
        %255 = vmatpush1.msra.mxu0 0.0
        %256 = vmatprep.subr.mxu0 0.0
        %257 = vmatpush1.msra.mxu0 0.0
        %258 = vmatprep.subr.mxu0 0.0
        %259 = vmatpush1.msra.mxu0 0.0
        %260 = vmatprep.subr.mxu0 0.0
        %261 = vmatpush1.msra.mxu0 0.0
        %262 = vmatprep.subr.mxu0 0.0
        %263 = vmatpush1.msra.mxu0 0.0
        %264 = vmatprep.subr.mxu0 0.0
        %265 = vmatpush1.msra.mxu0 0.0
        %266 = vmatprep.subr.mxu0 0.0
        %267 = vmatpush1.msra.mxu0 0.0
        %268 = vmatprep.subr.mxu0 0.0
        %269 = vmatpush1.msra.mxu0 0.0
        %270 = vmatprep.subr.mxu0 0.0
        %271 = vmatpush1.msra.mxu0 0.0
        %272 = vmatprep.mubr.f32.mxu0 0.0
        %v273 = vand.u32 %v198, 4294901760
        %v274 = vsub.f32 %v198, %v273
        %v275 = vand.u32 %v274, 4294901760
        %v276 = vsub.f32 %v274, %v275
        %v277 = vand.u32 %v276, 4294901760
        %278 = vmatmul.mubr.f32.gmra.mrb[0].mxu0 %v277
        %v279 = vpop.f32.mrb[0].mxu0
        %v280 = vadd.f32 0.0, %v279
        %v281 = vpop.f32.mrb[0].mxu0
        %282 = vdwg.mxu0
        %283 = vmatprep.subr.mxu0 0.0
        %v284 = vand.u32 %v188, 4294901760
        %v285 = vsub.f32 %v188, %v284
        %v286 = vand.u32 %v285, 4294901760
        %v287 = vsub.f32 %v285, %v286
        %v288 = vand.u32 %v287, 4294901760
        %289 = vmatpush1.msra.mxu0 %v288
        %290 = vmatprep.subr.mxu0 0.0
        %v291 = vand.u32 %v189, 4294901760
        %v292 = vsub.f32 %v189, %v291
        %v293 = vand.u32 %v292, 4294901760
        %v294 = vsub.f32 %v292, %v293
        %v295 = vand.u32 %v294, 4294901760
        %296 = vmatpush1.msra.mxu0 %v295
        %297 = vmatprep.subr.mxu0 0.0
        %v298 = vand.u32 %v190, 4294901760
        %v299 = vsub.f32 %v190, %v298
        %v300 = vand.u32 %v299, 4294901760
        %v301 = vsub.f32 %v299, %v300
        %v302 = vand.u32 %v301, 4294901760
        %303 = vmatpush1.msra.mxu0 %v302
        %304 = vmatprep.subr.mxu0 0.0
        %v305 = vand.u32 %v191, 4294901760
        %v306 = vsub.f32 %v191, %v305
        %v307 = vand.u32 %v306, 4294901760
        %v308 = vsub.f32 %v306, %v307
        %v309 = vand.u32 %v308, 4294901760
        %310 = vmatpush1.msra.mxu0 %v309
        %311 = vmatprep.subr.mxu0 0.0
        %v312 = vand.u32 %v192, 4294901760
        %v313 = vsub.f32 %v192, %v312
        %v314 = vand.u32 %v313, 4294901760
        %v315 = vsub.f32 %v313, %v314
        %v316 = vand.u32 %v315, 4294901760
        %317 = vmatpush1.msra.mxu0 %v316
        %318 = vmatprep.subr.mxu0 0.0
        %v319 = vand.u32 %v193, 4294901760
        %v320 = vsub.f32 %v193, %v319
        %v321 = vand.u32 %v320, 4294901760
        %v322 = vsub.f32 %v320, %v321
        %v323 = vand.u32 %v322, 4294901760
        %324 = vmatpush1.msra.mxu0 %v323
        %325 = vmatprep.subr.mxu0 0.0
        %v326 = vand.u32 %v194, 4294901760
        %v327 = vsub.f32 %v194, %v326
        %v328 = vand.u32 %v327, 4294901760
        %v329 = vsub.f32 %v327, %v328
        %v330 = vand.u32 %v329, 4294901760
        %331 = vmatpush1.msra.mxu0 %v330
        %332 = vmatprep.subr.mxu0 0.0
        %v333 = vand.u32 %v195, 4294901760
        %v334 = vsub.f32 %v195, %v333
        %v335 = vand.u32 %v334, 4294901760
        %v336 = vsub.f32 %v334, %v335
        %v337 = vand.u32 %v336, 4294901760
        %338 = vmatpush1.msra.mxu0 %v337
        %339 = vmatprep.subr.mxu0 0.0
        %340 = vmatpush1.msra.mxu0 0.0
        %341 = vmatprep.subr.mxu0 0.0
        %342 = vmatpush1.msra.mxu0 0.0
        %343 = vmatprep.subr.mxu0 0.0
        %344 = vmatpush1.msra.mxu0 0.0
        %345 = vmatprep.subr.mxu0 0.0
        %346 = vmatpush1.msra.mxu0 0.0
        %347 = vmatprep.subr.mxu0 0.0
        %348 = vmatpush1.msra.mxu0 0.0
        %349 = vmatprep.subr.mxu0 0.0
        %350 = vmatpush1.msra.mxu0 0.0
        %351 = vmatprep.subr.mxu0 0.0
        %352 = vmatpush1.msra.mxu0 0.0
        %353 = vmatprep.subr.mxu0 0.0
        %354 = vmatpush1.msra.mxu0 0.0
        %355 = vmatprep.subr.mxu0 0.0
        %356 = vmatpush1.msra.mxu0 0.0
        %357 = vmatprep.subr.mxu0 0.0
        %358 = vmatpush1.msra.mxu0 0.0
        %359 = vmatprep.subr.mxu0 0.0
        %360 = vmatpush1.msra.mxu0 0.0
        %361 = vmatprep.subr.mxu0 0.0
        %362 = vmatpush1.msra.mxu0 0.0
        %363 = vmatprep.subr.mxu0 0.0
        %364 = vmatpush1.msra.mxu0 0.0
        %365 = vmatprep.subr.mxu0 0.0
        %366 = vmatpush1.msra.mxu0 0.0
        %367 = vmatprep.subr.mxu0 0.0
        %368 = vmatpush1.msra.mxu0 0.0
        %369 = vmatprep.subr.mxu0 0.0
        %370 = vmatpush1.msra.mxu0 0.0
        %371 = vmatprep.subr.mxu0 0.0
        %372 = vmatpush1.msra.mxu0 0.0
        %373 = vmatprep.subr.mxu0 0.0
        %374 = vmatpush1.msra.mxu0 0.0
        %375 = vmatprep.subr.mxu0 0.0
        %376 = vmatpush1.msra.mxu0 0.0
        %377 = vmatprep.subr.mxu0 0.0
        %378 = vmatpush1.msra.mxu0 0.0
        %379 = vmatprep.subr.mxu0 0.0
        %380 = vmatpush1.msra.mxu0 0.0
        %381 = vmatprep.subr.mxu0 0.0
        %382 = vmatpush1.msra.mxu0 0.0
        %383 = vmatprep.subr.mxu0 0.0
        %384 = vmatpush1.msra.mxu0 0.0
        %385 = vmatprep.subr.mxu0 0.0
        %386 = vmatpush1.msra.mxu0 0.0
        %387 = vmatprep.mubr.f32.mxu0 0.0
        %v388 = vand.u32 %v198, 4294901760
        %389 = vmatmul.mubr.f32.gmra.mrb[0].mxu0 %v388
        %v390 = vpop.f32.mrb[0].mxu0
        %v391 = vadd.f32 %v280, %v390
        %v392 = vpop.f32.mrb[0].mxu0
        %393 = vdwg.mxu0
        %394 = vmatprep.subr.mxu0 0.0
        %v395 = vand.u32 %v188, 4294901760
        %v396 = vsub.f32 %v188, %v395
        %397 = vmatpush1.msra.mxu0 %v396
        %398 = vmatprep.subr.mxu0 0.0
        %v399 = vand.u32 %v189, 4294901760
        %v400 = vsub.f32 %v189, %v399
        %401 = vmatpush1.msra.mxu0 %v400
        %402 = vmatprep.subr.mxu0 0.0
        %v403 = vand.u32 %v190, 4294901760
        %v404 = vsub.f32 %v190, %v403
        %405 = vmatpush1.msra.mxu0 %v404
        %406 = vmatprep.subr.mxu0 0.0
        %v407 = vand.u32 %v191, 4294901760
        %v408 = vsub.f32 %v191, %v407
        %409 = vmatpush1.msra.mxu0 %v408
        %410 = vmatprep.subr.mxu0 0.0
        %v411 = vand.u32 %v192, 4294901760
        %v412 = vsub.f32 %v192, %v411
        %413 = vmatpush1.msra.mxu0 %v412
        %414 = vmatprep.subr.mxu0 0.0
        %v415 = vand.u32 %v193, 4294901760
        %v416 = vsub.f32 %v193, %v415
        %417 = vmatpush1.msra.mxu0 %v416
        %418 = vmatprep.subr.mxu0 0.0
        %v419 = vand.u32 %v194, 4294901760
        %v420 = vsub.f32 %v194, %v419
        %421 = vmatpush1.msra.mxu0 %v420
        %422 = vmatprep.subr.mxu0 0.0
        %v423 = vand.u32 %v195, 4294901760
        %v424 = vsub.f32 %v195, %v423
        %425 = vmatpush1.msra.mxu0 %v424
        %426 = vmatprep.subr.mxu0 0.0
        %427 = vmatpush1.msra.mxu0 0.0
        %428 = vmatprep.subr.mxu0 0.0
        %429 = vmatpush1.msra.mxu0 0.0
        %430 = vmatprep.subr.mxu0 0.0
        %431 = vmatpush1.msra.mxu0 0.0
        %432 = vmatprep.subr.mxu0 0.0
        %433 = vmatpush1.msra.mxu0 0.0
        %434 = vmatprep.subr.mxu0 0.0
        %435 = vmatpush1.msra.mxu0 0.0
        %436 = vmatprep.subr.mxu0 0.0
        %437 = vmatpush1.msra.mxu0 0.0
        %438 = vmatprep.subr.mxu0 0.0
        %439 = vmatpush1.msra.mxu0 0.0
        %440 = vmatprep.subr.mxu0 0.0
        %441 = vmatpush1.msra.mxu0 0.0
        %442 = vmatprep.subr.mxu0 0.0
        %443 = vmatpush1.msra.mxu0 0.0
        %444 = vmatprep.subr.mxu0 0.0
        %445 = vmatpush1.msra.mxu0 0.0
        %446 = vmatprep.subr.mxu0 0.0
        %447 = vmatpush1.msra.mxu0 0.0
        %448 = vmatprep.subr.mxu0 0.0
        %449 = vmatpush1.msra.mxu0 0.0
        %450 = vmatprep.subr.mxu0 0.0
        %451 = vmatpush1.msra.mxu0 0.0
        %452 = vmatprep.subr.mxu0 0.0
        %453 = vmatpush1.msra.mxu0 0.0
        %454 = vmatprep.subr.mxu0 0.0
        %455 = vmatpush1.msra.mxu0 0.0
        %456 = vmatprep.subr.mxu0 0.0
        %457 = vmatpush1.msra.mxu0 0.0
        %458 = vmatprep.subr.mxu0 0.0
        %459 = vmatpush1.msra.mxu0 0.0
        %460 = vmatprep.subr.mxu0 0.0
        %461 = vmatpush1.msra.mxu0 0.0
        %462 = vmatprep.subr.mxu0 0.0
        %463 = vmatpush1.msra.mxu0 0.0
        %464 = vmatprep.subr.mxu0 0.0
        %465 = vmatpush1.msra.mxu0 0.0
        %466 = vmatprep.subr.mxu0 0.0
        %467 = vmatpush1.msra.mxu0 0.0
        %468 = vmatprep.subr.mxu0 0.0
        %469 = vmatpush1.msra.mxu0 0.0
        %470 = vmatprep.subr.mxu0 0.0
        %471 = vmatpush1.msra.mxu0 0.0
        %472 = vmatprep.subr.mxu0 0.0
        %473 = vmatpush1.msra.mxu0 0.0
        %474 = vmatprep.mubr.f32.mxu0 0.0
        %v475 = vand.u32 %v198, 4294901760
        %v476 = vsub.f32 %v198, %v475
        %477 = vmatmul.mubr.f32.gmra.mrb[0].mxu0 %v476
        %v478 = vpop.f32.mrb[0].mxu0
        %v479 = vadd.f32 %v391, %v478
        %v480 = vpop.f32.mrb[0].mxu0
        %481 = vdwg.mxu0
        %482 = vmatprep.subr.mxu0 0.0
        %v483 = vand.u32 %v188, 4294901760
        %484 = vmatpush1.msra.mxu0 %v483
        %485 = vmatprep.subr.mxu0 0.0
        %v486 = vand.u32 %v189, 4294901760
        %487 = vmatpush1.msra.mxu0 %v486
        %488 = vmatprep.subr.mxu0 0.0
        %v489 = vand.u32 %v190, 4294901760
        %490 = vmatpush1.msra.mxu0 %v489
        %491 = vmatprep.subr.mxu0 0.0
        %v492 = vand.u32 %v191, 4294901760
        %493 = vmatpush1.msra.mxu0 %v492
        %494 = vmatprep.subr.mxu0 0.0
        %v495 = vand.u32 %v192, 4294901760
        %496 = vmatpush1.msra.mxu0 %v495
        %497 = vmatprep.subr.mxu0 0.0
        %v498 = vand.u32 %v193, 4294901760
        %499 = vmatpush1.msra.mxu0 %v498
        %500 = vmatprep.subr.mxu0 0.0
        %v501 = vand.u32 %v194, 4294901760
        %502 = vmatpush1.msra.mxu0 %v501
        %503 = vmatprep.subr.mxu0 0.0
        %v504 = vand.u32 %v195, 4294901760
        %505 = vmatpush1.msra.mxu0 %v504
        %506 = vmatprep.subr.mxu0 0.0
        %507 = vmatpush1.msra.mxu0 0.0
        %508 = vmatprep.subr.mxu0 0.0
        %509 = vmatpush1.msra.mxu0 0.0
        %510 = vmatprep.subr.mxu0 0.0
        %511 = vmatpush1.msra.mxu0 0.0
        %512 = vmatprep.subr.mxu0 0.0
        %513 = vmatpush1.msra.mxu0 0.0
        %514 = vmatprep.subr.mxu0 0.0
        %515 = vmatpush1.msra.mxu0 0.0
        %516 = vmatprep.subr.mxu0 0.0
        %517 = vmatpush1.msra.mxu0 0.0
        %518 = vmatprep.subr.mxu0 0.0
        %519 = vmatpush1.msra.mxu0 0.0
        %520 = vmatprep.subr.mxu0 0.0
        %521 = vmatpush1.msra.mxu0 0.0
        %522 = vmatprep.subr.mxu0 0.0
        %523 = vmatpush1.msra.mxu0 0.0
        %524 = vmatprep.subr.mxu0 0.0
        %525 = vmatpush1.msra.mxu0 0.0
        %526 = vmatprep.subr.mxu0 0.0
        %527 = vmatpush1.msra.mxu0 0.0
        %528 = vmatprep.subr.mxu0 0.0
        %529 = vmatpush1.msra.mxu0 0.0
        %530 = vmatprep.subr.mxu0 0.0
        %531 = vmatpush1.msra.mxu0 0.0
        %532 = vmatprep.subr.mxu0 0.0
        %533 = vmatpush1.msra.mxu0 0.0
        %534 = vmatprep.subr.mxu0 0.0
        %535 = vmatpush1.msra.mxu0 0.0
        %536 = vmatprep.subr.mxu0 0.0
        %537 = vmatpush1.msra.mxu0 0.0
        %538 = vmatprep.subr.mxu0 0.0
        %539 = vmatpush1.msra.mxu0 0.0
        %540 = vmatprep.subr.mxu0 0.0
        %541 = vmatpush1.msra.mxu0 0.0
        %542 = vmatprep.subr.mxu0 0.0
        %543 = vmatpush1.msra.mxu0 0.0
        %544 = vmatprep.subr.mxu0 0.0
        %545 = vmatpush1.msra.mxu0 0.0
        %546 = vmatprep.subr.mxu0 0.0
        %547 = vmatpush1.msra.mxu0 0.0
        %548 = vmatprep.subr.mxu0 0.0
        %549 = vmatpush1.msra.mxu0 0.0
        %550 = vmatprep.subr.mxu0 0.0
        %551 = vmatpush1.msra.mxu0 0.0
        %552 = vmatprep.subr.mxu0 0.0
        %553 = vmatpush1.msra.mxu0 0.0
        %554 = vmatprep.mubr.f32.mxu0 0.0
        %v555 = vand.u32 %v198, 4294901760
        %v556 = vsub.f32 %v198, %v555
        %v557 = vand.u32 %v556, 4294901760
        %558 = vmatmul.mubr.f32.gmra.mrb[0].mxu0 %v557
        %v559 = vpop.f32.mrb[0].mxu0
        %v560 = vadd.f32 %v479, %v559
        %v561 = vpop.f32.mrb[0].mxu0
        %562 = vdwg.mxu0
        %563 = vmatprep.subr.mxu0 0.0
        %v564 = vand.u32 %v188, 4294901760
        %v565 = vsub.f32 %v188, %v564
        %v566 = vand.u32 %v565, 4294901760
        %567 = vmatpush1.msra.mxu0 %v566
        %568 = vmatprep.subr.mxu0 0.0
        %v569 = vand.u32 %v189, 4294901760
        %v570 = vsub.f32 %v189, %v569
        %v571 = vand.u32 %v570, 4294901760
        %572 = vmatpush1.msra.mxu0 %v571
        %573 = vmatprep.subr.mxu0 0.0
        %v574 = vand.u32 %v190, 4294901760
        %v575 = vsub.f32 %v190, %v574
        %v576 = vand.u32 %v575, 4294901760
        %577 = vmatpush1.msra.mxu0 %v576
        %578 = vmatprep.subr.mxu0 0.0
        %v579 = vand.u32 %v191, 4294901760
        %v580 = vsub.f32 %v191, %v579
        %v581 = vand.u32 %v580, 4294901760
        %582 = vmatpush1.msra.mxu0 %v581
        %583 = vmatprep.subr.mxu0 0.0
        %v584 = vand.u32 %v192, 4294901760
        %v585 = vsub.f32 %v192, %v584
        %v586 = vand.u32 %v585, 4294901760
        %587 = vmatpush1.msra.mxu0 %v586
        %588 = vmatprep.subr.mxu0 0.0
        %v589 = vand.u32 %v193, 4294901760
        %v590 = vsub.f32 %v193, %v589
        %v591 = vand.u32 %v590, 4294901760
        %592 = vmatpush1.msra.mxu0 %v591
        %593 = vmatprep.subr.mxu0 0.0
        %v594 = vand.u32 %v194, 4294901760
        %v595 = vsub.f32 %v194, %v594
        %v596 = vand.u32 %v595, 4294901760
        %597 = vmatpush1.msra.mxu0 %v596
        %598 = vmatprep.subr.mxu0 0.0
        %v599 = vand.u32 %v195, 4294901760
        %v600 = vsub.f32 %v195, %v599
        %v601 = vand.u32 %v600, 4294901760
        %602 = vmatpush1.msra.mxu0 %v601
        %603 = vmatprep.subr.mxu0 0.0
        %604 = vmatpush1.msra.mxu0 0.0
        %605 = vmatprep.subr.mxu0 0.0
        %606 = vmatpush1.msra.mxu0 0.0
        %607 = vmatprep.subr.mxu0 0.0
        %608 = vmatpush1.msra.mxu0 0.0
        %609 = vmatprep.subr.mxu0 0.0
        %610 = vmatpush1.msra.mxu0 0.0
        %611 = vmatprep.subr.mxu0 0.0
        %612 = vmatpush1.msra.mxu0 0.0
        %613 = vmatprep.subr.mxu0 0.0
        %614 = vmatpush1.msra.mxu0 0.0
        %615 = vmatprep.subr.mxu0 0.0
        %616 = vmatpush1.msra.mxu0 0.0
        %617 = vmatprep.subr.mxu0 0.0
        %618 = vmatpush1.msra.mxu0 0.0
        %619 = vmatprep.subr.mxu0 0.0
        %620 = vmatpush1.msra.mxu0 0.0
        %621 = vmatprep.subr.mxu0 0.0
        %622 = vmatpush1.msra.mxu0 0.0
        %623 = vmatprep.subr.mxu0 0.0
        %624 = vmatpush1.msra.mxu0 0.0
        %625 = vmatprep.subr.mxu0 0.0
        %626 = vmatpush1.msra.mxu0 0.0
        %627 = vmatprep.subr.mxu0 0.0
        %628 = vmatpush1.msra.mxu0 0.0
        %629 = vmatprep.subr.mxu0 0.0
        %630 = vmatpush1.msra.mxu0 0.0
        %631 = vmatprep.subr.mxu0 0.0
        %632 = vmatpush1.msra.mxu0 0.0
        %633 = vmatprep.subr.mxu0 0.0
        %634 = vmatpush1.msra.mxu0 0.0
        %635 = vmatprep.subr.mxu0 0.0
        %636 = vmatpush1.msra.mxu0 0.0
        %637 = vmatprep.subr.mxu0 0.0
        %638 = vmatpush1.msra.mxu0 0.0
        %639 = vmatprep.subr.mxu0 0.0
        %640 = vmatpush1.msra.mxu0 0.0
        %641 = vmatprep.subr.mxu0 0.0
        %642 = vmatpush1.msra.mxu0 0.0
        %643 = vmatprep.subr.mxu0 0.0
        %644 = vmatpush1.msra.mxu0 0.0
        %645 = vmatprep.subr.mxu0 0.0
        %646 = vmatpush1.msra.mxu0 0.0
        %647 = vmatprep.subr.mxu0 0.0
        %648 = vmatpush1.msra.mxu0 0.0
        %649 = vmatprep.subr.mxu0 0.0
        %650 = vmatpush1.msra.mxu0 0.0
        %651 = vmatprep.mubr.f32.mxu0 0.0
        %v652 = vand.u32 %v198, 4294901760
        %653 = vmatmul.mubr.f32.gmra.mrb[0].mxu0 %v652
        %v654 = vpop.f32.mrb[0].mxu0
        %v655 = vadd.f32 %v560, %v654
        %v656 = vpop.f32.mrb[0].mxu0
        %657 = vdwg.mxu0
        %658 = vmatprep.subr.mxu0 0.0
        %v659 = vand.u32 %v188, 4294901760
        %660 = vmatpush1.msra.mxu0 %v659
        %661 = vmatprep.subr.mxu0 0.0
        %v662 = vand.u32 %v189, 4294901760
        %663 = vmatpush1.msra.mxu0 %v662
        %664 = vmatprep.subr.mxu0 0.0
        %v665 = vand.u32 %v190, 4294901760
        %666 = vmatpush1.msra.mxu0 %v665
        %667 = vmatprep.subr.mxu0 0.0
        %v668 = vand.u32 %v191, 4294901760
        %669 = vmatpush1.msra.mxu0 %v668
        %670 = vmatprep.subr.mxu0 0.0
        %v671 = vand.u32 %v192, 4294901760
        %672 = vmatpush1.msra.mxu0 %v671
        %673 = vmatprep.subr.mxu0 0.0
        %v674 = vand.u32 %v193, 4294901760
        %675 = vmatpush1.msra.mxu0 %v674
        %676 = vmatprep.subr.mxu0 0.0
        %v677 = vand.u32 %v194, 4294901760
        %678 = vmatpush1.msra.mxu0 %v677
        %679 = vmatprep.subr.mxu0 0.0
        %v680 = vand.u32 %v195, 4294901760
        %681 = vmatpush1.msra.mxu0 %v680
        %682 = vmatprep.subr.mxu0 0.0
        %683 = vmatpush1.msra.mxu0 0.0
        %684 = vmatprep.subr.mxu0 0.0
        %685 = vmatpush1.msra.mxu0 0.0
        %686 = vmatprep.subr.mxu0 0.0
        %687 = vmatpush1.msra.mxu0 0.0
        %688 = vmatprep.subr.mxu0 0.0
        %689 = vmatpush1.msra.mxu0 0.0
        %690 = vmatprep.subr.mxu0 0.0
        %691 = vmatpush1.msra.mxu0 0.0
        %692 = vmatprep.subr.mxu0 0.0
        %693 = vmatpush1.msra.mxu0 0.0
        %694 = vmatprep.subr.mxu0 0.0
        %695 = vmatpush1.msra.mxu0 0.0
        %696 = vmatprep.subr.mxu0 0.0
        %697 = vmatpush1.msra.mxu0 0.0
        %698 = vmatprep.subr.mxu0 0.0
        %699 = vmatpush1.msra.mxu0 0.0
        %700 = vmatprep.subr.mxu0 0.0
        %701 = vmatpush1.msra.mxu0 0.0
        %702 = vmatprep.subr.mxu0 0.0
        %703 = vmatpush1.msra.mxu0 0.0
        %704 = vmatprep.subr.mxu0 0.0
        %705 = vmatpush1.msra.mxu0 0.0
        %706 = vmatprep.subr.mxu0 0.0
        %707 = vmatpush1.msra.mxu0 0.0
        %708 = vmatprep.subr.mxu0 0.0
        %709 = vmatpush1.msra.mxu0 0.0
        %710 = vmatprep.subr.mxu0 0.0
        %711 = vmatpush1.msra.mxu0 0.0
        %712 = vmatprep.subr.mxu0 0.0
        %713 = vmatpush1.msra.mxu0 0.0
        %714 = vmatprep.subr.mxu0 0.0
        %715 = vmatpush1.msra.mxu0 0.0
        %716 = vmatprep.subr.mxu0 0.0
        %717 = vmatpush1.msra.mxu0 0.0
        %718 = vmatprep.subr.mxu0 0.0
        %719 = vmatpush1.msra.mxu0 0.0
        %720 = vmatprep.subr.mxu0 0.0
        %721 = vmatpush1.msra.mxu0 0.0
        %722 = vmatprep.subr.mxu0 0.0
        %723 = vmatpush1.msra.mxu0 0.0
        %724 = vmatprep.subr.mxu0 0.0
        %725 = vmatpush1.msra.mxu0 0.0
        %726 = vmatprep.subr.mxu0 0.0
        %727 = vmatpush1.msra.mxu0 0.0
        %728 = vmatprep.subr.mxu0 0.0
        %729 = vmatpush1.msra.mxu0 0.0
        %730 = vmatprep.mubr.f32.mxu0 0.0
        %v731 = vand.u32 %v198, 4294901760
        %732 = vmatmul.mubr.f32.gmra.mrb[0].mxu0 %v731
        %v733 = vpop.f32.mrb[0].mxu0
        %v734 = vadd.f32 %v655, %v733
        %v735 = vpop.f32.mrb[0].mxu0
        %736 = vdwg.mxu0
        %737 = vst [vmem:[%s176] sm:$0xff] %v734
        %s738 = sand.u32 %s94, 1
        %s739 = scalar_lea.sflag [#allocation4], %s738
        %s740 = sand.u32 %s94, 1
        %s741 = smul.addr %s740, 8
        %s742 = scalar_lea.vmem [#allocation5], %s741
        // Predicated region
        $region37: #{tpu_custom_call.1} parent=31 // pred_check
          %p743 = pneg %p104
        $region38: #{tpu_custom_call.1} parent=31 // pred_check_branch
          %745 = sbr.rel (%p743) target = $region40
        $region39: #{tpu_custom_call.1} parent=31 // pred_region
          %s747 = ssub.s32 128, 128
          %748 = vsyncadd %s739, %s747
          %s749 = smul.addr %s18, 128
          %s750 = scalar_lea.hbm %s3, %s749
          %s752 = sshll.u32 %s742, 4
          %s753 = int_to_ptr.vmem [resolvable:$true] %s752
          %755 = dma.vmem_to_hbm [thread:$0]  %s753, 128, %s750, %s739
        $region40: #{tpu_custom_call.1} parent=31 // pred_fallthru
          _
      $region32: #{tpu_custom_call.1} parent=5 // pred_fallthru
        _
      %p756 = scmp.le.s32.totalorder 2, %s13
      // Predicated region
      $region41: #{tpu_custom_call.1} parent=5 // pred_check
        %p757 = pneg %p756
      $region42: #{tpu_custom_call.1} parent=5 // pred_check_branch
        %759 = sbr.rel (%p757) target = $region44
      $region43: #{tpu_custom_call.1} parent=5 // pred_region
        %s760 = ssub.s32 %s13, 2
        // Predicated region
        $region45: #{tpu_custom_call.1} parent=43 // pred_check
          %p761 = pneg %p110
        $region46: #{tpu_custom_call.1} parent=43 // pred_check_branch
          %763 = sbr.rel (%p761) target = $region48
        $region47: #{tpu_custom_call.1} parent=43 // pred_region
          %s764 = sand.u32 %s95, 1
          %s765 = scalar_lea.sflag [#allocation4], %s764
          %s766 = sand.u32 %s95, 1
          %s767 = smul.addr %s766, 8
          %s768 = scalar_lea.vmem [#allocation5], %s767
          %769 = dma.done %s765, 128
        $region48: #{tpu_custom_call.1} parent=43 // pred_fallthru
          _
      $region44: #{tpu_custom_call.1} parent=5 // pred_fallthru
        _
    $region6: #{tpu_custom_call.1} parent=1 // loop_footer
      %s17 = sadd.s32 1, %s13
    $region7: #{tpu_custom_call.1} parent=1 // loop_footer_branch
      %12 = sbr.rel target = $region3
    $region8: #{tpu_custom_call.1} parent=1 // loop_exit
      _
    %770 = vsyncpa [#allocation3], 1
    %s771 = scalar_lea.sflag [#allocation3], 1
    %772 = vsyncpa %s771, 1
    %773 = vsyncpa [#allocation4], 1
    %s774 = scalar_lea.sflag [#allocation4], 1
    %775 = vsyncpa %s774, 1

</llo_original>
